<compile_context>
chip_gen: v5e
topology: v5e:2x2
jax: 0.10.0
libtpu: 0.0.40
codegen_flags: <defaults>
</compile_context>

<pallas_src>
import functools

import jax
import jax.numpy as jnp
from jax import lax
from jax.experimental import pallas as pl
from jax.experimental.pallas import tpu as pltpu


def _round_up(a, b):
    return ((a + b - 1) // b) * b


def _layernorm_kernel(x_ref, g_ref, o_ref, *, eps, inv_d):
    # x_ref: (TR, D) tile of rows; g_ref: (1, D) scale; o_ref: (TR, D)
    x = x_ref[...].astype(jnp.float32)

    # stable=True: divide each row by its max (narrow reciprocal + broadcast mul).
    # Kept on the XLU — it is the only cross-lane reduction left there.
    amax = jnp.max(x, axis=-1, keepdims=True)
    xs = x * (1.0 / amax)

    # Row sums on the otherwise idle MXU instead of the XLU: at D=128 three
    # cross-lane reductions per (8,128) vreg would saturate the 2 XLU units on
    # v6e/v7x before HBM does.  (TR,D)@(D,1) dots keep the reductions on the
    # vector-extended / MXU path.
    ones_col = jnp.ones((xs.shape[-1], 1), dtype=jnp.float32)
    mean = jnp.dot(xs, ones_col, preferred_element_type=jnp.float32) * inv_d

    # Two-pass (biased) variance E[(xs-mean)^2]: avoids catastrophic cancellation
    # of the single-pass E[xs^2]-mean^2 form for near-constant rows.
    d = xs - mean
    var = jnp.dot(d * d, ones_col, preferred_element_type=jnp.float32) * inv_d

    inv_std = lax.rsqrt(var + eps)              # narrow (TR, 1), EUP
    # Apply the (TR,1) inv_std and the (1,D) learned scale g as two broadcast
    # multiplies — no materialized full-width folded-scale temp.
    o_ref[...] = ((d * inv_std) * g_ref[...].astype(jnp.float32)).astype(o_ref.dtype)


_VMEM_IO_BUDGET = 16 * 1024 * 1024   # bytes for the 2-in + 2-out double-buffered tiles
_VMEM_LIMIT = 48 * 1024 * 1024       # explicit scoped-VMEM cap (ok on v5e/v6e/v7x)


def _row_tile_cap():
    """Generation-aware cap on the row tile.

    v7x (the 64-MiB-VMEM-per-TensorCore part) has ~3.2 TB/s HBM per TC, so a
    1024-row f32/D=128 step moves in ~0.3 us — comparable to the ~0.35 us
    per-grid-step overhead.  Give it 4x bigger tiles; v5e/v6e stay at 1024 where
    they are already cleanly HBM-bound.  Best-effort query; falls back to 1024.
    """
    try:
        vmem_bytes = pltpu.get_tpu_info().vmem_capacity_bytes
        if vmem_bytes is not None and vmem_bytes <= 64 * 1024 * 1024:
            return 4096
    except Exception:
        pass
    return 1024


def layer_norm(x, g, *, stable=True, _row_tile=None):
    """Pallas implementation of the PyTorch LayerNorm (stable=True, dim=-1)."""
    assert stable, "only the default stable=True path is implemented"
    orig_shape, orig_dtype = x.shape, x.dtype
    D = orig_shape[-1]
    assert g.shape == (D,)

    # eps rule from the PyTorch module
    eps = 1e-05 if orig_dtype == jnp.float32 else 1e-03

    # flatten leading dims to rows
    x2 = x.reshape(-1, D)
    N = x2.shape[0]
    g2 = g.reshape(1, D)

    # --- row-tile selection (dtype- and generation-aware) ---------------------
    if _row_tile is not None:
        TR = _row_tile                       # test hook; must be a multiple of 8
    elif N <= 32:
        TR = N                               # single full block (block dim == array dim)
    else:
        itemsize = jnp.dtype(orig_dtype).itemsize
        lane_d = _round_up(D, 128)           # lanes occupied per row in VMEM
        # 2 double-buffered input tiles + 2 double-buffered output tiles
        tr_vmem = _VMEM_IO_BUDGET // (4 * lane_d * itemsize)
        # keep ~8 grid steps when possible (pipelining + v7x megacore sharding)
        tr_steps = max(32, _round_up(pl.cdiv(N, 8), 32))
        TR = min(_row_tile_cap(), tr_vmem, tr_steps)
        TR = max(32, (TR // 32) * 32)        # multiple of 32 (bf16 / i8 sublane packing)

    # Non-divisible N: let Pallas mask the partial final block (no wrapper pad /
    # slice — rows are independent so OOB tail garbage cannot reach valid rows).
    grid = (pl.cdiv(N, TR),)

    out = pl.pallas_call(
        functools.partial(_layernorm_kernel, eps=eps, inv_d=1.0 / D),
        out_shape=jax.ShapeDtypeStruct((N, D), orig_dtype),
        grid_spec=pltpu.PrefetchScalarGridSpec(
            num_scalar_prefetch=0,
            grid=grid,
            in_specs=[
                pl.BlockSpec((TR, D), lambda i: (i, 0)),
                pl.BlockSpec((1, D), lambda i: (0, 0)),
            ],
            out_specs=pl.BlockSpec((TR, D), lambda i: (i, 0)),
        ),
        compiler_params=pltpu.CompilerParams(
            dimension_semantics=("parallel",),
            vmem_limit_bytes=_VMEM_LIMIT,
        ),
    )(x2, g2)

    return out.reshape(orig_shape)


def layer_norm_ref(x, g):
    # pure-JAX reference mirroring the PyTorch forward (computed in f32)
    eps = 1e-05 if x.dtype == jnp.float32 else 1e-03
    x = x.astype(jnp.float32)
    g = g.astype(jnp.float32)
    xs = x / jnp.max(x, axis=-1, keepdims=True)
    mean = jnp.mean(xs, axis=-1, keepdims=True)
    var = jnp.mean((xs - mean) ** 2, axis=-1, keepdims=True)
    return (xs - mean) * lax.rsqrt(var + eps) * g


if __name__ == "__main__":
    key = jax.random.PRNGKey(0)
    k1, k2, k3, k4, k5 = jax.random.split(key, 5)

    # Case 1: representative of UNetModel's CrossAttention LayerNorm
    # (dim = model_channels = 128), small batch / sequence, non-trivial g.
    x1 = jax.random.normal(k1, (2, 8, 128), dtype=jnp.float32)
    g1 = 1.0 + 0.1 * jax.random.normal(k5, (128,), dtype=jnp.float32)
    out1 = jax.block_until_ready(layer_norm(x1, g1))
    assert out1.shape == x1.shape and out1.dtype == x1.dtype
    assert jnp.allclose(out1, layer_norm_ref(x1, g1), atol=1e-4, rtol=1e-4)

    # Case 2: narrow feature dim (test-only; real UNet LN widths are 128 / 256).
    x2 = jax.random.normal(k2, (3, 5, 32), dtype=jnp.float32)
    g2 = jnp.ones((32,), dtype=jnp.float32)
    out2 = jax.block_until_ready(layer_norm(x2, g2))
    assert out2.shape == x2.shape and out2.dtype == x2.dtype
    assert jnp.allclose(out2, layer_norm_ref(x2, g2), atol=1e-4, rtol=1e-4)

    # Case 3: N % TR != 0 with a forced small row tile — exercises the masked
    # partial final block (replaces the old wrapper pad + slice path).
    x3 = jax.random.normal(k3, (4, 50, 128), dtype=jnp.float32)
    g3 = jnp.ones((128,), dtype=jnp.float32)
    out3 = jax.block_until_ready(layer_norm(x3, g3, _row_tile=64))
    assert out3.shape == x3.shape
    assert jnp.allclose(out3, layer_norm_ref(x3, g3), atol=1e-4, rtol=1e-4)

    # Case 4: bf16 activations (dtype-aware tiling, eps=1e-3 path, and a
    # partial final block with the default tile selection).
    x4 = jax.random.normal(k4, (2, 100, 128), dtype=jnp.float32).astype(jnp.bfloat16)
    g4 = jnp.ones((128,), dtype=jnp.bfloat16)
    out4 = jax.block_until_ready(layer_norm(x4, g4))
    assert out4.shape == x4.shape and out4.dtype == jnp.bfloat16
    assert jnp.allclose(out4.astype(jnp.float32), layer_norm_ref(x4, g4),
                        atol=5e-2, rtol=5e-2)

    print("KERNEL_OK")
</pallas_src>

<mosaic_0001>
module attributes {stable_mosaic.version = 11 : i64} {
  func.func @_layernorm_kernel(%arg0: i32, %arg1: memref<16x128xf32, #tpu.memory_space<vmem>>, %arg2: memref<1x128xf32, #tpu.memory_space<vmem>>, %arg3: memref<16x128xf32, #tpu.memory_space<vmem>>) attributes {dimension_semantics = [#tpu.dimension_semantics<parallel>], iteration_bounds = array<i64: 1>, scalar_prefetch = 0 : i64, scratch_operands = 0 : i64, tpu.core_type = #tpu.core_type<tc>, window_params = [{transform_indices = @transform_0, window_bounds = array<i64: 16, 128>}, {pipeline_mode = #tpu.pipeline_mode<synchronous>, transform_indices = @transform_1, window_bounds = array<i64: 1, 128>}, {transform_indices = @transform_2, window_bounds = array<i64: 16, 128>}]} {
    %c0 = arith.constant 0 : index
    %c0_0 = arith.constant 0 : index
    %0 = vector.load %arg1[%c0, %c0_0] : memref<16x128xf32, #tpu.memory_space<vmem>>, vector<16x128xf32>
    %cst = arith.constant dense<0xFF800000> : vector<16xf32>
    %1 = vector.multi_reduction <maximumf>, %0, %cst [1] : vector<16x128xf32> to vector<16xf32>
    %2 = vector.shape_cast %1 : vector<16xf32> to vector<16x1xf32>
    %cst_1 = arith.constant 1.000000e+00 : f32
    %3 = vector.broadcast %cst_1 : f32 to vector<16x1xf32>
    %4 = arith.divf %3, %2 : vector<16x1xf32>
    %5 = vector.broadcast %4 : vector<16x1xf32> to vector<16x128xf32>
    %6 = arith.mulf %0, %5 : vector<16x128xf32>
    %cst_2 = arith.constant 1.000000e+00 : f32
    %7 = vector.broadcast %cst_2 : f32 to vector<128x1xf32>
    %cst_3 = arith.constant dense<0.000000e+00> : vector<16x1xf32>
    %8 = tpu.matmul %6, %7, %cst_3 {dimension_numbers = #tpu.dot_dimension_numbers<[1], [0], [0], [1], [0, 0, 1, 1], [], []>} : vector<16x128xf32>, vector<128x1xf32>, vector<16x1xf32> -> vector<16x1xf32>
    %cst_4 = arith.constant 7.812500e-03 : f32
    %9 = vector.broadcast %cst_4 : f32 to vector<16x1xf32>
    %10 = arith.mulf %8, %9 : vector<16x1xf32>
    %11 = vector.broadcast %10 : vector<16x1xf32> to vector<16x128xf32>
    %12 = arith.subf %6, %11 : vector<16x128xf32>
    %13 = arith.mulf %12, %12 : vector<16x128xf32>
    %cst_5 = arith.constant dense<0.000000e+00> : vector<16x1xf32>
    %14 = tpu.matmul %13, %7, %cst_5 {dimension_numbers = #tpu.dot_dimension_numbers<[1], [0], [0], [1], [0, 0, 1, 1], [], []>} : vector<16x128xf32>, vector<128x1xf32>, vector<16x1xf32> -> vector<16x1xf32>
    %cst_6 = arith.constant 7.812500e-03 : f32
    %15 = vector.broadcast %cst_6 : f32 to vector<16x1xf32>
    %16 = arith.mulf %14, %15 : vector<16x1xf32>
    %cst_7 = arith.constant 9.99999974E-6 : f32
    %17 = vector.broadcast %cst_7 : f32 to vector<16x1xf32>
    %18 = arith.addf %16, %17 : vector<16x1xf32>
    %19 = math.rsqrt %18 : vector<16x1xf32>
    %20 = vector.broadcast %19 : vector<16x1xf32> to vector<16x128xf32>
    %21 = arith.mulf %12, %20 : vector<16x128xf32>
    %c0_8 = arith.constant 0 : index
    %c0_9 = arith.constant 0 : index
    %22 = vector.load %arg2[%c0_8, %c0_9] : memref<1x128xf32, #tpu.memory_space<vmem>>, vector<1x128xf32>
    %23 = vector.broadcast %22 : vector<1x128xf32> to vector<16x128xf32>
    %24 = arith.mulf %21, %23 : vector<16x128xf32>
    %c0_10 = arith.constant 0 : index
    %c0_11 = arith.constant 0 : index
    %25 = vector.load %arg3[%c0_10, %c0_11] : memref<16x128xf32, #tpu.memory_space<vmem>>, vector<16x128xf32>
    tpu.vector_store %arg3[%c0_10, %c0_11], %24 {strides = array<i32>} : memref<16x128xf32, #tpu.memory_space<vmem>>, vector<16x128xf32>,
    return
  }
  func.func @transform_0(%arg0: i32) -> (i32, i32) {
    %c0_i32 = arith.constant 0 : i32
    %c0_i32_0 = arith.constant 0 : i32
    return %arg0, %c0_i32 : i32, i32
  }
  func.func @transform_1(%arg0: i32) -> (i32, i32) {
    %c0_i32 = arith.constant 0 : i32
    %c0_i32_0 = arith.constant 0 : i32
    %c0_i32_1 = arith.constant 0 : i32
    return %c0_i32, %c0_i32_0 : i32, i32
  }
  func.func @transform_2(%arg0: i32) -> (i32, i32) {
    %c0_i32 = arith.constant 0 : i32
    %c0_i32_0 = arith.constant 0 : i32
    return %arg0, %c0_i32 : i32, i32
  }
}

</mosaic_0001>

<llo_original>
// kernel: tpu_custom_call.1
$region0: #{tpu_custom_call.1}
  #allocation0 [shape = 'u32[]', space=smem, size = 0x4, offset = 0x4, fixed_abs, tag = 'smem constant byte address 0x4 - core index']
  #allocation1 [shape = 'u32[72,128]{1,0:T(1,128)}', space=vmem, size = 0x9000, scoped, tag = 'internal scratch']
  %s0 = inlined_call_operand.hbm [shape: f32[16,128], index: 0, kind: input, shape index: {}]
  %s1 = inlined_call_operand.hbm [shape: f32[1,128], index: 1, kind: input, shape index: {}]
  %s2 = inlined_call_operand.hbm [shape: f32[16,128], index: 2, kind: output, shape index: {}]
  %s3 = sld [smem:[#allocation0]]
  $region26: #{tpu_custom_call.1} parent=0
    _
  %s5 = ssub.s32 1, %s3
  %s6 = scalar_select 0, %s5, %s3
  $region1: #{tpu_custom_call.1} parent=0
    #allocation2 [shape = 'u8[8192]{0}', space=vmem, size = 0x2000, scoped, tag = 'input window, operand 0, single buffered']
    #allocation3 [shape = 's32[1]{0}', space=sflag, size = 0x4, scoped, tag = 'scoped memory for tpu_custom_call.1']
    #allocation4 [shape = 's32[1]{0}', space=sflag, size = 0x4, scoped, tag = 'scoped memory for tpu_custom_call.1']
    #allocation5 [shape = 'u8[512]{0}', space=vmem, size = 0x400, scoped, tag = 'input window, operand 1, single buffered']
    #allocation6 [shape = 's32[1]{0}', space=sflag, size = 0x4, scoped, tag = 'scoped memory for tpu_custom_call.1']
    #allocation7 [shape = 'u8[8192]{0}', space=vmem, size = 0x2000, scoped, tag = 'output window, operand 0, single buffered']
    %7 = vsyncpa [#allocation3], 0
    %8 = vsyncpa [#allocation6], 0
    %9 = vsyncpa [#allocation4], 0
    // Predicated region
    $region2: #{tpu_custom_call.1} parent=1 // pred_check
      _
    $region3: #{tpu_custom_call.1} parent=1 // pred_check_branch
      %11 = sbr.rel (0) target = $region5
    $region4: #{tpu_custom_call.1} parent=1 // pred_region
      %13 = vsyncadd [#allocation3], 0
      %s14 = sshll.u32 %s0, 4
      %s15 = int_to_ptr.hbm [resolvable:$true] %s14
      %s16 = sshll.u32 [#allocation2], 4
      %s17 = int_to_ptr.vmem [resolvable:$true] %s16
      %22 = dma.hbm_to_vmem [thread:$0]  %s15, 256, %s17, [#allocation3], 128, 128, 8
    $region5: #{tpu_custom_call.1} parent=1 // pred_fallthru
      _
    // Predicated region
    $region6: #{tpu_custom_call.1} parent=1 // pred_check
      _
    $region7: #{tpu_custom_call.1} parent=1 // pred_check_branch
      %24 = sbr.rel (0) target = $region9
    $region8: #{tpu_custom_call.1} parent=1 // pred_region
      %26 = vsyncadd [#allocation6], 0
      %s28 = sshll.u32 %s1, 4
      %s29 = int_to_ptr.hbm [resolvable:$true] %s28
      %s30 = sshll.u32 [#allocation5], 4
      %s31 = int_to_ptr.vmem [resolvable:$true] %s30
      %33 = dma.hbm_to_vmem [thread:$0]  %s29, 16, %s31, [#allocation6]
    $region9: #{tpu_custom_call.1} parent=1 // pred_fallthru
      _
    // Predicated region
    $region10: #{tpu_custom_call.1} parent=1 // pred_check
      _
    $region11: #{tpu_custom_call.1} parent=1 // pred_check_branch
      %35 = sbr.rel (0) target = $region13
    $region12: #{tpu_custom_call.1} parent=1 // pred_region
      %37 = dma.done [#allocation3], 256
    $region13: #{tpu_custom_call.1} parent=1 // pred_fallthru
      _
    // Predicated region
    $region14: #{tpu_custom_call.1} parent=1 // pred_check
      _
    $region15: #{tpu_custom_call.1} parent=1 // pred_check_branch
      %39 = sbr.rel (0) target = $region17
    $region16: #{tpu_custom_call.1} parent=1 // pred_region
      %41 = dma.done [#allocation6], 16
    $region17: #{tpu_custom_call.1} parent=1 // pred_fallthru
      _
    %v42 = vld [vmem:[#allocation2] sm:$0xff]
    %v43 = vld [vmem:[#allocation2 + $0x8] sm:$0xff]
    %44 = vmax.xlane.f32.xlu0 %v42
    %v45 = vpop.xlane.xlu0 %44
    %46 = vmax.xlane.f32.xlu0 %v43
    %v47 = vpop.xlane.xlu0 %46
    %v48 = vrcp.pop %v45
    %v49 = vmul.f32 %v45, %v48
    %v50 = vsub.f32 1.0, %v49
    %v51 = vmul.f32 %v48, %v50
    %v52 = vadd.f32 %v48, %v51
    %vm53 = vweird.f32 %v45
    %vm54 = vweird.f32 %v48
    %vm55 = vmor %vm53, %vm54
    %v56 = vsel %vm55, %v48, %v52
    %v57 = vand.u32 2147483647, %v45
    %vm58 = vcmp.eq.f32.partialorder %v57, 8.507059e+37
    %v59 = vand.u32 %v45, 2147483648
    %v60 = vor.u32 1.1754944e-38, %v59
    %v61 = vsel %vm58, %v60, %v56
    %v62 = vmul.f32 1.0, %v61
    %v63 = vrcp.pop %v47
    %v64 = vmul.f32 %v47, %v63
    %v65 = vsub.f32 1.0, %v64
    %v66 = vmul.f32 %v63, %v65
    %v67 = vadd.f32 %v63, %v66
    %vm68 = vweird.f32 %v47
    %vm69 = vweird.f32 %v63
    %vm70 = vmor %vm68, %vm69
    %v71 = vsel %vm70, %v63, %v67
    %v72 = vand.u32 2147483647, %v47
    %vm73 = vcmp.eq.f32.partialorder %v72, 8.507059e+37
    %v74 = vand.u32 %v47, 2147483648
    %v75 = vor.u32 1.1754944e-38, %v74
    %v76 = vsel %vm73, %v75, %v71
    %v77 = vmul.f32 1.0, %v76
    %v78 = vmul.f32 %v42, %v62
    %v79 = vmul.f32 %v43, %v77
    %80 = vmatpush.msra.mxu0 1.0
    %81 = vmatpush.msra.mxu0 1.0
    %82 = vmatpush.msra.mxu0 1.0
    %83 = vmatpush.msra.mxu0 1.0
    %84 = vmatpush.msra.mxu0 1.0
    %85 = vmatpush.msra.mxu0 1.0
    %86 = vmatpush.msra.mxu0 1.0
    %87 = vmatpush.msra.mxu0 1.0
    %88 = vmatpush.msra.mxu0 1.0
    %89 = vmatpush.msra.mxu0 1.0
    %90 = vmatpush.msra.mxu0 1.0
    %91 = vmatpush.msra.mxu0 1.0
    %92 = vmatpush.msra.mxu0 1.0
    %93 = vmatpush.msra.mxu0 1.0
    %94 = vmatpush.msra.mxu0 1.0
    %95 = vmatpush.msra.mxu0 1.0
    %96 = vmatmul.f32.gmra.mxu0 %v78
    %v97 = vpop.f32.mrf.mxu0
    %v98 = vadd.f32 0.0, %v97
    %99 = vmatmul.f32.gmra.mxu0 %v79
    %v100 = vpop.f32.mrf.mxu0
    %v101 = vadd.f32 0.0, %v100
    %102 = vdwg.mxu0
    %v103 = vmul.f32 %v98, 0.0078125
    %v104 = vmul.f32 %v101, 0.0078125
    %106 = vset.pattern.permute.xlu0 0
    %107 = vperm.xlu0 %106, %v103
    %v108 = vpop.permute.xlu0 %107
    %111 = vset.pattern.permute.xlu0 0
    %112 = vperm.xlu0 %111, %v104
    %v113 = vpop.permute.xlu0 %112
    %v115 = vsub.f32 %v78, %v108
    %v116 = vsub.f32 %v79, %v113
    %v117 = vmul.f32 %v115, %v115
    %v118 = vmul.f32 %v116, %v116
    %119 = vmatpush.msra.mxu0 1.0
    %120 = vmatpush.msra.mxu0 1.0
    %121 = vmatpush.msra.mxu0 1.0
    %122 = vmatpush.msra.mxu0 1.0
    %123 = vmatpush.msra.mxu0 1.0
    %124 = vmatpush.msra.mxu0 1.0
    %125 = vmatpush.msra.mxu0 1.0
    %126 = vmatpush.msra.mxu0 1.0
    %127 = vmatpush.msra.mxu0 1.0
    %128 = vmatpush.msra.mxu0 1.0
    %129 = vmatpush.msra.mxu0 1.0
    %130 = vmatpush.msra.mxu0 1.0
    %131 = vmatpush.msra.mxu0 1.0
    %132 = vmatpush.msra.mxu0 1.0
    %133 = vmatpush.msra.mxu0 1.0
    %134 = vmatpush.msra.mxu0 1.0
    %135 = vmatmul.f32.gmra.mxu0 %v117
    %v136 = vpop.f32.mrf.mxu0
    %v137 = vadd.f32 0.0, %v136
    %138 = vmatmul.f32.gmra.mxu0 %v118
    %v139 = vpop.f32.mrf.mxu0
    %v140 = vadd.f32 0.0, %v139
    %141 = vdwg.mxu0
    %v142 = vmul.f32 %v137, 0.0078125
    %v143 = vmul.f32 %v140, 0.0078125
    %v144 = vadd.f32 %v142, 1e-05
    %v145 = vadd.f32 %v143, 1e-05
    %v146 = vrsqrt.pop %v144
    %v147 = vmul.f32 %v146, %v144
    %v148 = vmul.f32 %v147, %v146
    %v149 = vmul.f32 0.5, %v148
    %v150 = vsub.f32 1.5, %v149
    %v151 = vmul.f32 %v146, %v150
    %vm152 = vweird.f32 %v144
    %vm153 = vweird.f32 %v146
    %vm154 = vmor %vm152, %vm153
    %v155 = vsel %vm154, %v146, %v151
    %v156 = vrsqrt.pop %v145
    %v157 = vmul.f32 %v156, %v145
    %v158 = vmul.f32 %v157, %v156
    %v159 = vmul.f32 0.5, %v158
    %v160 = vsub.f32 1.5, %v159
    %v161 = vmul.f32 %v156, %v160
    %vm162 = vweird.f32 %v145
    %vm163 = vweird.f32 %v156
    %vm164 = vmor %vm162, %vm163
    %v165 = vsel %vm164, %v156, %v161
    %167 = vset.pattern.permute.xlu0 0
    %168 = vperm.xlu0 %167, %v155
    %v169 = vpop.permute.xlu0 %168
    %172 = vset.pattern.permute.xlu0 0
    %173 = vperm.xlu0 %172, %v165
    %v174 = vpop.permute.xlu0 %173
    %v176 = vmul.f32 %v115, %v169
    %v177 = vmul.f32 %v116, %v174
    %v178 = vld [vmem:[#allocation5] sm:$0x1]
    %v180 = vperm.slane %v178, 0
    %v182 = vmul.f32 %v176, %v180
    %v183 = vmul.f32 %v177, %v180
    %184 = vst [vmem:[#allocation7] sm:$0xff] %v182
    %185 = vst [vmem:[#allocation7 + $0x8] sm:$0xff] %v183
    // Predicated region
    $region18: #{tpu_custom_call.1} parent=1 // pred_check
      _
    $region19: #{tpu_custom_call.1} parent=1 // pred_check_branch
      %187 = sbr.rel (0) target = $region21
    $region20: #{tpu_custom_call.1} parent=1 // pred_region
      %189 = vsyncadd [#allocation4], 0
      %s190 = sshll.u32 [#allocation7], 4
      %s191 = int_to_ptr.vmem [resolvable:$true] %s190
      %s192 = sshll.u32 %s2, 4
      %s193 = int_to_ptr.hbm [resolvable:$true] %s192
      %198 = dma.vmem_to_hbm [thread:$0]  %s191, 256, %s193, [#allocation4], 128, 128, 8
    $region21: #{tpu_custom_call.1} parent=1 // pred_fallthru
      _
    // Predicated region
    $region22: #{tpu_custom_call.1} parent=1 // pred_check
      _
    $region23: #{tpu_custom_call.1} parent=1 // pred_check_branch
      %200 = sbr.rel (0) target = $region25
    $region24: #{tpu_custom_call.1} parent=1 // pred_region
      %202 = dma.done [#allocation4], 256
    $region25: #{tpu_custom_call.1} parent=1 // pred_fallthru
      _
    %203 = vsyncpa [#allocation3], 1
    %204 = vsyncpa [#allocation6], 1
    %205 = vsyncpa [#allocation4], 1

</llo_original>
